<compile_context>
chip_gen: v7x
topology: tpu7x:2x2x1
jax: 0.10.0
libtpu: 0.0.40
codegen_flags: <defaults>
</compile_context>

<pallas_src>
import jax
import jax.numpy as jnp
from jax.experimental import pallas as pl
from jax.experimental.pallas import tpu as pltpu

LANES = 128  # lane width of the output slab / padded classifier head


def gcn4_kernel(a_ref, wstk_ref, misc_ref, head_ref, out_ref):
    """4-layer GCN + mean-pool + classifier.

    a_ref    : (N, N)        normalized adjacency D^{-1/2} A D^{-1/2}
    wstk_ref : (3, H, H)     W2, W3, W4 stacked
    misc_ref : (6, Wm)       rows = [w1, b1, b2, b3, b4, h0n-as-row], Wm = max(H, N)
    head_ref : (H+1, 128)    rows 0..H-1 = Wc (lane-padded), row H = bc (lane-padded)
    out_ref  : (8, 128)      logits broadcast into a dense slab (row 0, cols :C valid)
    """
    N = a_ref.shape[0]
    H = wstk_ref.shape[1]

    A = a_ref[...]                                   # (N, N)
    misc = misc_ref[...]                             # (6, Wm)

    w1 = misc[0:1, :H]                               # (1, H)
    b1 = misc[1:2, :H]                               # (1, H)
    h_row = misc[5:6, :N]                            # (1, N) normalized in-degrees

    # Layer 1: A_hat @ (h0 @ W1) == (A_hat @ h0) * w1   (K=1 contraction).
    # VPU elementwise multiply + XLU lane-reduce + VPU broadcast; no MXU needed.
    ah = jnp.sum(A * h_row, axis=1, keepdims=True)   # (N, 1) == A_hat @ h0
    h = jnp.maximum(ah * w1 + b1, 0.0)               # (N, H)

    # Layers 2..4 on the MXU.
    for i in range(3):
        w = wstk_ref[i]                              # (H, H), static index
        b = misc[2 + i:3 + i, :H]                    # (1, H)
        hw = jnp.dot(h, w, preferred_element_type=jnp.float32)    # feature transform
        agg = jnp.dot(A, hw, preferred_element_type=jnp.float32)  # neighbor aggregation
        h = jnp.maximum(agg + b, 0.0)

    # Mean-pool over nodes, then classifier head (lane-padded to 128).
    hg = jnp.mean(h, axis=0, keepdims=True)          # (1, H)
    head = head_ref[...]                             # (H+1, 128)
    wc = head[:H, :]                                 # (H, 128), 8-aligned slice
    bc = head[H:H + 1, :]                            # (1, 128), 8-aligned start (H mult of 8)
    logits = jnp.dot(hg, wc, preferred_element_type=jnp.float32) + bc   # (1, 128)

    # Dense, unmasked full-tile store; valid logits live at [0, :n_classes].
    out_ref[...] = jnp.broadcast_to(logits, out_ref.shape)


def gcn_classifier_4hid(a_hat, h0, params, n_classes):
    """params = [w1, b1, w2, b2, w3, b3, w4, b4, wc, bc]."""
    w1, b1, w2, b2, w3, b3, w4, b4, wc, bc = params
    N = a_hat.shape[0]
    H = w1.shape[1]
    C = n_classes

    # 'normal' normalization folded into the wrapper (population std, eps-guarded).
    mean = jnp.mean(h0)
    std = jnp.sqrt(jnp.mean((h0 - mean) ** 2))
    h0n = (h0 - mean) / jnp.maximum(std, 1e-12)

    Wm = max(H, N)

    def lane_pad(x, width):
        return jnp.zeros((x.shape[0], width), jnp.float32).at[:, :x.shape[1]].set(x)

    # Pack 18 tensors into 4 DMAs (layout plumbing only; no compute hoisting).
    w_stack = jnp.stack([w2, w3, w4], axis=0)                     # (3, H, H)
    misc = jnp.concatenate(
        [lane_pad(w1, Wm), lane_pad(b1, Wm), lane_pad(b2, Wm),
         lane_pad(b3, Wm), lane_pad(b4, Wm),
         lane_pad(h0n.reshape(1, N), Wm)], axis=0)                # (6, Wm)
    head = jnp.concatenate(
        [lane_pad(wc, LANES), lane_pad(bc, LANES)], axis=0)       # (H+1, 128)

    inputs = (a_hat, w_stack, misc, head)
    in_bytes = sum(int(x.size) * 4 for x in inputs)
    out_bytes = 8 * LANES * 4
    flops = (
        2 * N * N + 2 * N * H                     # layer-1 reduce + scale/bias
        + 3 * (2 * N * H * H + 2 * N * N * H)     # layers 2-4 (transform + aggregate)
        + 2 * H * LANES                           # classifier (lane-padded)
    )

    vmem = pl.BlockSpec(memory_space=pltpu.MemorySpace.VMEM)
    out = pl.pallas_call(
        gcn4_kernel,
        out_shape=jax.ShapeDtypeStruct((8, LANES), jnp.float32),
        in_specs=[vmem] * len(inputs),
        out_specs=vmem,
        cost_estimate=pl.CostEstimate(
            flops=flops, transcendentals=0,
            bytes_accessed=in_bytes + out_bytes),
    )(*inputs)

    return out[0:1, :C]


def gcn_ref(a_hat, h0, params):
    """Pure-JAX reference for correctness checking."""
    w1, b1, w2, b2, w3, b3, w4, b4, wc, bc = params
    mean = jnp.mean(h0)
    std = jnp.sqrt(jnp.mean((h0 - mean) ** 2))
    h = (h0 - mean) / jnp.maximum(std, 1e-12)
    for w, b in [(w1, b1), (w2, b2), (w3, b3), (w4, b4)]:
        h = jnp.maximum(a_hat @ (h @ w) + b, 0.0)
    hg = jnp.mean(h, axis=0, keepdims=True)
    return hg @ wc + bc


def build_graph(n_nodes):
    """Deterministic small undirected graph: ring + a few chords (degrees differ)."""
    A = jnp.zeros((n_nodes, n_nodes), jnp.float32)
    idx = jnp.arange(n_nodes)
    A = A.at[idx, (idx + 1) % n_nodes].set(1.0)
    A = A.at[(idx + 1) % n_nodes, idx].set(1.0)
    for u, v in [(0, 5), (2, 9), (3, 12), (7, 14), (1, 10)]:
        A = A.at[u, v].set(1.0)
        A = A.at[v, u].set(1.0)
    return A


def make_params(key, in_dim, hidden_dim, n_classes):
    dims = [in_dim] + list(hidden_dim)
    keys = jax.random.split(key, 2 * len(hidden_dim) + 2)
    params = []
    for i in range(len(hidden_dim)):
        w = jax.random.normal(keys[2 * i], (dims[i], dims[i + 1]), jnp.float32) * 0.3
        b = jax.random.normal(keys[2 * i + 1], (1, dims[i + 1]), jnp.float32) * 0.1
        params += [w, b]
    wc = jax.random.normal(keys[-2], (hidden_dim[-1], n_classes), jnp.float32) * 0.3
    bc = jax.random.normal(keys[-1], (1, n_classes), jnp.float32) * 0.1
    params += [wc, bc]
    return params


if __name__ == "__main__":
    N = 16                         # number of graph nodes
    in_dim = 1                     # feature = in-degree (scalar per node)
    hidden_dim = [32, 32, 32, 32]  # GCNClassifier_4hid: 4 GraphConv layers
    n_classes = 4

    # Graph construction + GCN 'both' normalization (glue, plain JAX).
    A = build_graph(N)                                   # 0/1 symmetric adjacency
    deg = jnp.sum(A, axis=0)                             # in-degrees (== out-degrees)
    dinv = 1.0 / jnp.sqrt(deg)
    a_hat = dinv[:, None] * A * dinv[None, :]            # D^{-1/2} A D^{-1/2}
    h0 = deg.reshape(N, 1).astype(jnp.float32)           # g.in_degrees().view(-1,1).float()

    params = make_params(jax.random.PRNGKey(0), in_dim, hidden_dim, n_classes)

    logits = gcn_classifier_4hid(a_hat, h0, params, n_classes)
    jax.block_until_ready(logits)

    ref = gcn_ref(a_hat, h0, params)
    assert logits.shape == (1, n_classes)
    assert bool(jnp.all(jnp.isfinite(logits)))
    assert bool(jnp.allclose(logits, ref, rtol=1e-3, atol=1e-3))
    print("KERNEL_OK")
</pallas_src>

<mosaic_0001>
module attributes {stable_mosaic.version = 11 : i64} {
  func.func @gcn4_kernel(%arg0: memref<16x16xf32, #tpu.memory_space<vmem>>, %arg1: memref<3x32x32xf32, #tpu.memory_space<vmem>>, %arg2: memref<6x32xf32, #tpu.memory_space<vmem>>, %arg3: memref<33x128xf32, #tpu.memory_space<vmem>>, %arg4: memref<8x128xf32, #tpu.memory_space<vmem>>) attributes {dimension_semantics = [], scalar_prefetch = 0 : i64, scratch_operands = 0 : i64, tpu.core_type = #tpu.core_type<tc>} {
    %c0 = arith.constant 0 : index
    %c0_0 = arith.constant 0 : index
    %0 = vector.load %arg0[%c0, %c0_0] : memref<16x16xf32, #tpu.memory_space<vmem>>, vector<16x16xf32>
    %c0_1 = arith.constant 0 : index
    %c0_2 = arith.constant 0 : index
    %1 = vector.load %arg2[%c0_1, %c0_2] : memref<6x32xf32, #tpu.memory_space<vmem>>, vector<6x32xf32>
    %2 = vector.extract_strided_slice %1 {offsets = [0, 0], sizes = [1, 32], strides = [1, 1]} : vector<6x32xf32> to vector<1x32xf32>
    %3 = vector.extract_strided_slice %1 {offsets = [1, 0], sizes = [1, 32], strides = [1, 1]} : vector<6x32xf32> to vector<1x32xf32>
    %4 = vector.extract_strided_slice %1 {offsets = [5, 0], sizes = [1, 16], strides = [1, 1]} : vector<6x32xf32> to vector<1x16xf32>
    %5 = vector.broadcast %4 : vector<1x16xf32> to vector<16x16xf32>
    %6 = arith.mulf %0, %5 : vector<16x16xf32>
    %cst = arith.constant dense<0.000000e+00> : vector<16xf32>
    %7 = vector.multi_reduction <add>, %6, %cst [1] : vector<16x16xf32> to vector<16xf32>
    %8 = vector.shape_cast %7 : vector<16xf32> to vector<16x1xf32>
    %9 = vector.broadcast %8 : vector<16x1xf32> to vector<16x32xf32>
    %10 = vector.broadcast %2 : vector<1x32xf32> to vector<16x32xf32>
    %11 = arith.mulf %9, %10 : vector<16x32xf32>
    %12 = vector.broadcast %3 : vector<1x32xf32> to vector<16x32xf32>
    %13 = arith.addf %11, %12 : vector<16x32xf32>
    %cst_3 = arith.constant 0.000000e+00 : f32
    %14 = vector.broadcast %cst_3 : f32 to vector<16x32xf32>
    %15 = arith.maximumf %13, %14 : vector<16x32xf32>
    %c0_4 = arith.constant 0 : index
    %c0_5 = arith.constant 0 : index
    %c0_6 = arith.constant 0 : index
    %16 = vector.load %arg1[%c0_4, %c0_5, %c0_6] : memref<3x32x32xf32, #tpu.memory_space<vmem>>, vector<1x32x32xf32>
    %17 = vector.shape_cast %16 : vector<1x32x32xf32> to vector<32x32xf32>
    %18 = vector.extract_strided_slice %1 {offsets = [2, 0], sizes = [1, 32], strides = [1, 1]} : vector<6x32xf32> to vector<1x32xf32>
    %cst_7 = arith.constant dense<0.000000e+00> : vector<16x32xf32>
    %19 = tpu.matmul %15, %17, %cst_7 {dimension_numbers = #tpu.dot_dimension_numbers<[1], [0], [0], [1], [0, 0, 1, 1], [], []>} : vector<16x32xf32>, vector<32x32xf32>, vector<16x32xf32> -> vector<16x32xf32>
    %cst_8 = arith.constant dense<0.000000e+00> : vector<16x32xf32>
    %20 = tpu.matmul %0, %19, %cst_8 {dimension_numbers = #tpu.dot_dimension_numbers<[1], [0], [0], [1], [0, 0, 1, 1], [], []>} : vector<16x16xf32>, vector<16x32xf32>, vector<16x32xf32> -> vector<16x32xf32>
    %21 = vector.broadcast %18 : vector<1x32xf32> to vector<16x32xf32>
    %22 = arith.addf %20, %21 : vector<16x32xf32>
    %cst_9 = arith.constant 0.000000e+00 : f32
    %23 = vector.broadcast %cst_9 : f32 to vector<16x32xf32>
    %24 = arith.maximumf %22, %23 : vector<16x32xf32>
    %c1 = arith.constant 1 : index
    %c0_10 = arith.constant 0 : index
    %c0_11 = arith.constant 0 : index
    %25 = vector.load %arg1[%c1, %c0_10, %c0_11] : memref<3x32x32xf32, #tpu.memory_space<vmem>>, vector<1x32x32xf32>
    %26 = vector.shape_cast %25 : vector<1x32x32xf32> to vector<32x32xf32>
    %27 = vector.extract_strided_slice %1 {offsets = [3, 0], sizes = [1, 32], strides = [1, 1]} : vector<6x32xf32> to vector<1x32xf32>
    %cst_12 = arith.constant dense<0.000000e+00> : vector<16x32xf32>
    %28 = tpu.matmul %24, %26, %cst_12 {dimension_numbers = #tpu.dot_dimension_numbers<[1], [0], [0], [1], [0, 0, 1, 1], [], []>} : vector<16x32xf32>, vector<32x32xf32>, vector<16x32xf32> -> vector<16x32xf32>
    %cst_13 = arith.constant dense<0.000000e+00> : vector<16x32xf32>
    %29 = tpu.matmul %0, %28, %cst_13 {dimension_numbers = #tpu.dot_dimension_numbers<[1], [0], [0], [1], [0, 0, 1, 1], [], []>} : vector<16x16xf32>, vector<16x32xf32>, vector<16x32xf32> -> vector<16x32xf32>
    %30 = vector.broadcast %27 : vector<1x32xf32> to vector<16x32xf32>
    %31 = arith.addf %29, %30 : vector<16x32xf32>
    %cst_14 = arith.constant 0.000000e+00 : f32
    %32 = vector.broadcast %cst_14 : f32 to vector<16x32xf32>
    %33 = arith.maximumf %31, %32 : vector<16x32xf32>
    %c2 = arith.constant 2 : index
    %c0_15 = arith.constant 0 : index
    %c0_16 = arith.constant 0 : index
    %34 = vector.load %arg1[%c2, %c0_15, %c0_16] : memref<3x32x32xf32, #tpu.memory_space<vmem>>, vector<1x32x32xf32>
    %35 = vector.shape_cast %34 : vector<1x32x32xf32> to vector<32x32xf32>
    %36 = vector.extract_strided_slice %1 {offsets = [4, 0], sizes = [1, 32], strides = [1, 1]} : vector<6x32xf32> to vector<1x32xf32>
    %cst_17 = arith.constant dense<0.000000e+00> : vector<16x32xf32>
    %37 = tpu.matmul %33, %35, %cst_17 {dimension_numbers = #tpu.dot_dimension_numbers<[1], [0], [0], [1], [0, 0, 1, 1], [], []>} : vector<16x32xf32>, vector<32x32xf32>, vector<16x32xf32> -> vector<16x32xf32>
    %cst_18 = arith.constant dense<0.000000e+00> : vector<16x32xf32>
    %38 = tpu.matmul %0, %37, %cst_18 {dimension_numbers = #tpu.dot_dimension_numbers<[1], [0], [0], [1], [0, 0, 1, 1], [], []>} : vector<16x16xf32>, vector<16x32xf32>, vector<16x32xf32> -> vector<16x32xf32>
    %39 = vector.broadcast %36 : vector<1x32xf32> to vector<16x32xf32>
    %40 = arith.addf %38, %39 : vector<16x32xf32>
    %cst_19 = arith.constant 0.000000e+00 : f32
    %41 = vector.broadcast %cst_19 : f32 to vector<16x32xf32>
    %42 = arith.maximumf %40, %41 : vector<16x32xf32>
    %cst_20 = arith.constant dense<0.000000e+00> : vector<32xf32>
    %43 = vector.multi_reduction <add>, %42, %cst_20 [0] : vector<16x32xf32> to vector<32xf32>
    %44 = vector.shape_cast %43 : vector<32xf32> to vector<1x32xf32>
    %cst_21 = arith.constant 1.600000e+01 : f32
    %45 = vector.broadcast %cst_21 : f32 to vector<1x32xf32>
    %46 = arith.divf %44, %45 : vector<1x32xf32>
    %c0_22 = arith.constant 0 : index
    %c0_23 = arith.constant 0 : index
    %47 = vector.load %arg3[%c0_22, %c0_23] : memref<33x128xf32, #tpu.memory_space<vmem>>, vector<33x128xf32>
    %48 = vector.extract_strided_slice %47 {offsets = [0, 0], sizes = [32, 128], strides = [1, 1]} : vector<33x128xf32> to vector<32x128xf32>
    %49 = vector.extract_strided_slice %47 {offsets = [32, 0], sizes = [1, 128], strides = [1, 1]} : vector<33x128xf32> to vector<1x128xf32>
    %cst_24 = arith.constant dense<0.000000e+00> : vector<1x128xf32>
    %50 = tpu.matmul %46, %48, %cst_24 {dimension_numbers = #tpu.dot_dimension_numbers<[1], [0], [0], [1], [0, 0, 1, 1], [], []>} : vector<1x32xf32>, vector<32x128xf32>, vector<1x128xf32> -> vector<1x128xf32>
    %51 = arith.addf %50, %49 : vector<1x128xf32>
    %52 = vector.shape_cast %51 : vector<1x128xf32> to vector<1x128xf32>
    %53 = vector.broadcast %52 : vector<1x128xf32> to vector<8x128xf32>
    %c0_25 = arith.constant 0 : index
    %c0_26 = arith.constant 0 : index
    %54 = vector.load %arg4[%c0_25, %c0_26] : memref<8x128xf32, #tpu.memory_space<vmem>>, vector<8x128xf32>
    tpu.vector_store %arg4[%c0_25, %c0_26], %53 {strides = array<i32>} : memref<8x128xf32, #tpu.memory_space<vmem>>, vector<8x128xf32>,
    return
  }
}

</mosaic_0001>

<llo_original>
// kernel: tpu_custom_call.1
$region0: #{tpu_custom_call.1}
  #allocation0 [shape = 'u32[]', space=smem, size = 0x4, offset = 0x4, fixed_abs, tag = 'smem constant byte address 0x4 - core index']
  #allocation1 [shape = 'u32[144,128]{1,0:T(1,128)}', space=vmem, size = 0x12000, scoped, tag = 'internal scratch']
  %s0 = inlined_call_operand.hbm [shape: f32[16,16], index: 0, kind: input, shape index: {}]
  %s1 = inlined_call_operand.hbm [shape: f32[3,32,32], index: 1, kind: input, shape index: {}]
  %s2 = inlined_call_operand.hbm [shape: f32[6,32], index: 2, kind: input, shape index: {}]
  %s3 = inlined_call_operand.hbm [shape: f32[33,128], index: 3, kind: input, shape index: {}]
  %s4 = inlined_call_operand.hbm [shape: f32[8,128], index: 4, kind: output, shape index: {}]
  %s5 = sld [smem:[#allocation0]]
  $region42: #{tpu_custom_call.1} parent=0
    _
  %s7 = ssub.s32 1, %s5
  %s8 = scalar_select 0, %s7, %s5
  $region1: #{tpu_custom_call.1} parent=0
    #allocation2 [shape = 'u8[8192]{0}', space=vmem, size = 0x2000, scoped, tag = 'input window, operand 0, single buffered']
    #allocation3 [shape = 's32[1]{0}', space=sflag, size = 0x4, scoped, tag = 'scoped memory for tpu_custom_call.1']
    #allocation4 [shape = 's32[1]{0}', space=sflag, size = 0x4, scoped, tag = 'scoped memory for tpu_custom_call.1']
    #allocation5 [shape = 'u8[49152]{0}', space=vmem, size = 0xc000, scoped, tag = 'input window, operand 1, single buffered']
    #allocation6 [shape = 's32[1]{0}', space=sflag, size = 0x4, scoped, tag = 'scoped memory for tpu_custom_call.1']
    #allocation7 [shape = 'u8[4096]{0}', space=vmem, size = 0x1000, scoped, tag = 'input window, operand 2, single buffered']
    #allocation8 [shape = 'u8[20480]{0}', space=vmem, size = 0x5000, scoped, tag = 'input window, operand 3, single buffered']
    #allocation9 [shape = 's32[1]{0}', space=sflag, size = 0x4, scoped, tag = 'scoped memory for tpu_custom_call.1']
    #allocation10 [shape = 'u8[4096]{0}', space=vmem, size = 0x1000, scoped, tag = 'output window, operand 0, single buffered']
    %9 = vsyncpa [#allocation3], 0
    %10 = vsyncpa [#allocation6], 0
    %11 = vsyncpa [#allocation9], 0
    %12 = vsyncpa [#allocation4], 0
    // Predicated region
    $region2: #{tpu_custom_call.1} parent=1 // pred_check
      _
    $region3: #{tpu_custom_call.1} parent=1 // pred_check_branch
      %14 = sbr.rel (0) target = $region5
    $region4: #{tpu_custom_call.1} parent=1 // pred_region
      %s16 = ssub.s32 256, 256
      %17 = vsyncadd [#allocation3], %s16
      %s18 = sshll.u32 [#allocation2], 4
      %s19 = int_to_ptr.vmem [resolvable:$true] %s18
      %24 = dma.hbm_to_vmem [thread:$0]  %s0, 256, %s19, [#allocation3], 128, 128, 8
    $region5: #{tpu_custom_call.1} parent=1 // pred_fallthru
      _
    // Predicated region
    $region6: #{tpu_custom_call.1} parent=1 // pred_check
      _
    $region7: #{tpu_custom_call.1} parent=1 // pred_check_branch
      %26 = sbr.rel (0) target = $region9
    $region8: #{tpu_custom_call.1} parent=1 // pred_region
      %s28 = ssub.s32 1536, 1536
      %29 = vsyncadd [#allocation6], %s28
      %s30 = sshll.u32 [#allocation5], 4
      %s31 = int_to_ptr.vmem [resolvable:$true] %s30
      %36 = dma.hbm_to_vmem [thread:$0]  %s1, 1536, %s31, [#allocation6], 128, 128, 8
    $region9: #{tpu_custom_call.1} parent=1 // pred_fallthru
      _
    // Predicated region
    $region10: #{tpu_custom_call.1} parent=1 // pred_check
      _
    $region11: #{tpu_custom_call.1} parent=1 // pred_check_branch
      %38 = sbr.rel (0) target = $region13
    $region12: #{tpu_custom_call.1} parent=1 // pred_region
      %s40 = ssub.s32 128, 128
      %41 = vsyncadd [#allocation6], %s40
      %s43 = sshll.u32 [#allocation7], 4
      %s44 = int_to_ptr.vmem [resolvable:$true] %s43
      %46 = dma.hbm_to_vmem [thread:$0]  %s2, 128, %s44, [#allocation6]
    $region13: #{tpu_custom_call.1} parent=1 // pred_fallthru
      _
    // Predicated region
    $region14: #{tpu_custom_call.1} parent=1 // pred_check
      _
    $region15: #{tpu_custom_call.1} parent=1 // pred_check_branch
      %48 = sbr.rel (0) target = $region17
    $region16: #{tpu_custom_call.1} parent=1 // pred_region
      %s50 = ssub.s32 640, 640
      %51 = vsyncadd [#allocation9], %s50
      %s52 = sshll.u32 [#allocation8], 4
      %s53 = int_to_ptr.vmem [resolvable:$true] %s52
      %58 = dma.hbm_to_vmem [thread:$0]  %s3, 640, %s53, [#allocation9], 128, 128, 8
    $region17: #{tpu_custom_call.1} parent=1 // pred_fallthru
      _
    // Predicated region
    $region18: #{tpu_custom_call.1} parent=1 // pred_check
      _
    $region19: #{tpu_custom_call.1} parent=1 // pred_check_branch
      %60 = sbr.rel (0) target = $region21
    $region20: #{tpu_custom_call.1} parent=1 // pred_region
      %61 = dma.done [#allocation3], 256
    $region21: #{tpu_custom_call.1} parent=1 // pred_fallthru
      _
    // Predicated region
    $region22: #{tpu_custom_call.1} parent=1 // pred_check
      _
    $region23: #{tpu_custom_call.1} parent=1 // pred_check_branch
      %63 = sbr.rel (0) target = $region25
    $region24: #{tpu_custom_call.1} parent=1 // pred_region
      %64 = dma.done [#allocation6], 1536
    $region25: #{tpu_custom_call.1} parent=1 // pred_fallthru
      _
    // Predicated region
    $region26: #{tpu_custom_call.1} parent=1 // pred_check
      _
    $region27: #{tpu_custom_call.1} parent=1 // pred_check_branch
      %66 = sbr.rel (0) target = $region29
    $region28: #{tpu_custom_call.1} parent=1 // pred_region
      %67 = dma.done [#allocation6], 128
    $region29: #{tpu_custom_call.1} parent=1 // pred_fallthru
      _
    // Predicated region
    $region30: #{tpu_custom_call.1} parent=1 // pred_check
      _
    $region31: #{tpu_custom_call.1} parent=1 // pred_check_branch
      %69 = sbr.rel (0) target = $region33
    $region32: #{tpu_custom_call.1} parent=1 // pred_region
      %70 = dma.done [#allocation9], 640
    $region33: #{tpu_custom_call.1} parent=1 // pred_fallthru
      _
    %v71 = vld [vmem:[#allocation2] sm:$0xff]
    %v72 = vld [vmem:[#allocation2 + $0x8] sm:$0xff]
    %v73 = vld [vmem:[#allocation7] sm:$0x3f]
    %v74 = vlaneseq
    %v75 = vshrl.u32 %v74, 7
    %v76 = vsub.s32 5, %v75
    %v77 = vrot.slane %v73, %v76
    %v78 = vmul.f32 %v71, %v77
    %v79 = vmul.f32 %v72, %v77
    %vm80 = vcmask 130048
    %v81 = vsel %vm80, %v78, 0.0
    %82 = vadd.xlane.f32.xlu0 %v81
    %v83 = vpop.xlane.xlu0 %82
    %v84 = vsel %vm80, %v79, 0.0
    %85 = vadd.xlane.f32.xlu0 %v84
    %v86 = vpop.xlane.xlu0 %85
    %v87 = vlaneseq
    %v88 = vshrl.u32 %v87, 7
    %v89 = vsub.s32 0, %v88
    %v90 = vrot.slane %v73, %v89
    %v91 = vmul.f32 %v83, %v90
    %v92 = vmul.f32 %v86, %v90
    %v93 = vlaneseq
    %v94 = vshrl.u32 %v93, 7
    %v95 = vsub.s32 1, %v94
    %v96 = vrot.slane %v73, %v95
    %v97 = vadd.f32 %v91, %v96
    %v98 = vadd.f32 %v92, %v96
    %v99 = vmax.f32 %v97, 0.0
    %v100 = vmax.f32 %v98, 0.0
    %v101 = vld [vmem:[#allocation5] sm:$0xff]
    %v102 = vld [vmem:[#allocation5 + $0x8] sm:$0xff]
    %v103 = vld [vmem:[#allocation5 + $0x10] sm:$0xff]
    %v104 = vld [vmem:[#allocation5 + $0x18] sm:$0xff]
    %vm105 = vcmask 261120
    %v107 = vsel %vm105, %v99, 0
    %v110 = vsel %vm105, %v100, 0
    %112 = vmatprep.subr.mxu0 0.0
    %113 = vmatpush1.msra.mxu0 %v101
    %114 = vmatprep.subr.mxu0 0.0
    %115 = vmatpush1.msra.mxu0 %v102
    %116 = vmatprep.subr.mxu0 0.0
    %117 = vmatpush1.msra.mxu0 %v103
    %118 = vmatprep.subr.mxu0 0.0
    %119 = vmatpush1.msra.mxu0 %v104
    %120 = vmatprep.subr.mxu0 0.0
    %121 = vmatpush1.msra.mxu0 0.0
    %122 = vmatprep.subr.mxu0 0.0
    %123 = vmatpush1.msra.mxu0 0.0
    %124 = vmatprep.subr.mxu0 0.0
    %125 = vmatpush1.msra.mxu0 0.0
    %126 = vmatprep.subr.mxu0 0.0
    %127 = vmatpush1.msra.mxu0 0.0
    %128 = vmatprep.subr.mxu0 0.0
    %129 = vmatpush1.msra.mxu0 0.0
    %130 = vmatprep.subr.mxu0 0.0
    %131 = vmatpush1.msra.mxu0 0.0
    %132 = vmatprep.subr.mxu0 0.0
    %133 = vmatpush1.msra.mxu0 0.0
    %134 = vmatprep.subr.mxu0 0.0
    %135 = vmatpush1.msra.mxu0 0.0
    %136 = vmatprep.subr.mxu0 0.0
    %137 = vmatpush1.msra.mxu0 0.0
    %138 = vmatprep.subr.mxu0 0.0
    %139 = vmatpush1.msra.mxu0 0.0
    %140 = vmatprep.subr.mxu0 0.0
    %141 = vmatpush1.msra.mxu0 0.0
    %142 = vmatprep.subr.mxu0 0.0
    %143 = vmatpush1.msra.mxu0 0.0
    %144 = vmatprep.subr.mxu0 0.0
    %145 = vmatpush1.msra.mxu0 0.0
    %146 = vmatprep.subr.mxu0 0.0
    %147 = vmatpush1.msra.mxu0 0.0
    %148 = vmatprep.subr.mxu0 0.0
    %149 = vmatpush1.msra.mxu0 0.0
    %150 = vmatprep.subr.mxu0 0.0
    %151 = vmatpush1.msra.mxu0 0.0
    %152 = vmatprep.subr.mxu0 0.0
    %153 = vmatpush1.msra.mxu0 0.0
    %154 = vmatprep.subr.mxu0 0.0
    %155 = vmatpush1.msra.mxu0 0.0
    %156 = vmatprep.subr.mxu0 0.0
    %157 = vmatpush1.msra.mxu0 0.0
    %158 = vmatprep.subr.mxu0 0.0
    %159 = vmatpush1.msra.mxu0 0.0
    %160 = vmatprep.subr.mxu0 0.0
    %161 = vmatpush1.msra.mxu0 0.0
    %162 = vmatprep.subr.mxu0 0.0
    %163 = vmatpush1.msra.mxu0 0.0
    %164 = vmatprep.subr.mxu0 0.0
    %165 = vmatpush1.msra.mxu0 0.0
    %166 = vmatprep.subr.mxu0 0.0
    %167 = vmatpush1.msra.mxu0 0.0
    %168 = vmatprep.subr.mxu0 0.0
    %169 = vmatpush1.msra.mxu0 0.0
    %170 = vmatprep.subr.mxu0 0.0
    %171 = vmatpush1.msra.mxu0 0.0
    %172 = vmatprep.subr.mxu0 0.0
    %173 = vmatpush1.msra.mxu0 0.0
    %174 = vmatprep.subr.mxu0 0.0
    %175 = vmatpush1.msra.mxu0 0.0
    %176 = vmatprep.mubr.f32.mxu0 0.0
    %177 = vmatmul.mubr.f32.gmra.mrb[0].mxu0 %v107
    %v178 = vpop.f32.mrb[0].mxu0
    %v179 = vadd.f32 0.0, %v178
    %v180 = vpop.f32.mrb[0].mxu0
    %181 = vmatprep.mubr.f32.mxu0 0.0
    %182 = vmatmul.mubr.f32.gmra.mrb[0].mxu0 %v110
    %v183 = vpop.f32.mrb[0].mxu0
    %v184 = vadd.f32 0.0, %v183
    %v185 = vpop.f32.mrb[0].mxu0
    %186 = vdwg.mxu0
    %v187 = vlaneseq
    %v188 = vshrl.u32 %v187, 7
    %v189 = vsub.s32 2, %v188
    %v190 = vrot.slane %v73, %v189
    %v192 = vsel %vm80, %v71, 0
    %v195 = vsel %vm80, %v72, 0
    %197 = vmatprep.subr.mxu0 0.0
    %198 = vmatpush1.msra.mxu0 %v179
    %199 = vmatprep.subr.mxu0 0.0
    %200 = vmatpush1.msra.mxu0 %v184
    %201 = vmatprep.subr.mxu0 0.0
    %202 = vmatpush1.msra.mxu0 0.0
    %203 = vmatprep.subr.mxu0 0.0
    %204 = vmatpush1.msra.mxu0 0.0
    %205 = vmatprep.subr.mxu0 0.0
    %206 = vmatpush1.msra.mxu0 0.0
    %207 = vmatprep.subr.mxu0 0.0
    %208 = vmatpush1.msra.mxu0 0.0
    %209 = vmatprep.subr.mxu0 0.0
    %210 = vmatpush1.msra.mxu0 0.0
    %211 = vmatprep.subr.mxu0 0.0
    %212 = vmatpush1.msra.mxu0 0.0
    %213 = vmatprep.subr.mxu0 0.0
    %214 = vmatpush1.msra.mxu0 0.0
    %215 = vmatprep.subr.mxu0 0.0
    %216 = vmatpush1.msra.mxu0 0.0
    %217 = vmatprep.subr.mxu0 0.0
    %218 = vmatpush1.msra.mxu0 0.0
    %219 = vmatprep.subr.mxu0 0.0
    %220 = vmatpush1.msra.mxu0 0.0
    %221 = vmatprep.subr.mxu0 0.0
    %222 = vmatpush1.msra.mxu0 0.0
    %223 = vmatprep.subr.mxu0 0.0
    %224 = vmatpush1.msra.mxu0 0.0
    %225 = vmatprep.subr.mxu0 0.0
    %226 = vmatpush1.msra.mxu0 0.0
    %227 = vmatprep.subr.mxu0 0.0
    %228 = vmatpush1.msra.mxu0 0.0
    %229 = vmatprep.subr.mxu0 0.0
    %230 = vmatpush1.msra.mxu0 0.0
    %231 = vmatprep.subr.mxu0 0.0
    %232 = vmatpush1.msra.mxu0 0.0
    %233 = vmatprep.subr.mxu0 0.0
    %234 = vmatpush1.msra.mxu0 0.0
    %235 = vmatprep.subr.mxu0 0.0
    %236 = vmatpush1.msra.mxu0 0.0
    %237 = vmatprep.subr.mxu0 0.0
    %238 = vmatpush1.msra.mxu0 0.0
    %239 = vmatprep.subr.mxu0 0.0
    %240 = vmatpush1.msra.mxu0 0.0
    %241 = vmatprep.subr.mxu0 0.0
    %242 = vmatpush1.msra.mxu0 0.0
    %243 = vmatprep.subr.mxu0 0.0
    %244 = vmatpush1.msra.mxu0 0.0
    %245 = vmatprep.subr.mxu0 0.0
    %246 = vmatpush1.msra.mxu0 0.0
    %247 = vmatprep.subr.mxu0 0.0
    %248 = vmatpush1.msra.mxu0 0.0
    %249 = vmatprep.subr.mxu0 0.0
    %250 = vmatpush1.msra.mxu0 0.0
    %251 = vmatprep.subr.mxu0 0.0
    %252 = vmatpush1.msra.mxu0 0.0
    %253 = vmatprep.subr.mxu0 0.0
    %254 = vmatpush1.msra.mxu0 0.0
    %255 = vmatprep.subr.mxu0 0.0
    %256 = vmatpush1.msra.mxu0 0.0
    %257 = vmatprep.subr.mxu0 0.0
    %258 = vmatpush1.msra.mxu0 0.0
    %259 = vmatprep.subr.mxu0 0.0
    %260 = vmatpush1.msra.mxu0 0.0
    %261 = vmatprep.mubr.f32.mxu0 0.0
    %262 = vmatmul.mubr.f32.gmra.mrb[0].mxu0 %v192
    %v263 = vpop.f32.mrb[0].mxu0
    %v264 = vadd.f32 %v190, %v263
    %v265 = vpop.f32.mrb[0].mxu0
    %266 = vmatprep.mubr.f32.mxu0 0.0
    %267 = vmatmul.mubr.f32.gmra.mrb[0].mxu0 %v195
    %v268 = vpop.f32.mrb[0].mxu0
    %v269 = vadd.f32 %v190, %v268
    %v270 = vpop.f32.mrb[0].mxu0
    %271 = vdwg.mxu0
    %v272 = vmax.f32 %v264, 0.0
    %v273 = vmax.f32 %v269, 0.0
    %s274 = scalar_lea.vmem [#allocation5], 32
    %v275 = vld [vmem:[%s274] sm:$0xff]
    %v276 = vld [vmem:[%s274 + $0x8] sm:$0xff]
    %v277 = vld [vmem:[%s274 + $0x10] sm:$0xff]
    %v278 = vld [vmem:[%s274 + $0x18] sm:$0xff]
    %v280 = vsel %vm105, %v272, 0
    %v283 = vsel %vm105, %v273, 0
    %285 = vmatprep.subr.mxu0 0.0
    %286 = vmatpush1.msra.mxu0 %v275
    %287 = vmatprep.subr.mxu0 0.0
    %288 = vmatpush1.msra.mxu0 %v276
    %289 = vmatprep.subr.mxu0 0.0
    %290 = vmatpush1.msra.mxu0 %v277
    %291 = vmatprep.subr.mxu0 0.0
    %292 = vmatpush1.msra.mxu0 %v278
    %293 = vmatprep.subr.mxu0 0.0
    %294 = vmatpush1.msra.mxu0 0.0
    %295 = vmatprep.subr.mxu0 0.0
    %296 = vmatpush1.msra.mxu0 0.0
    %297 = vmatprep.subr.mxu0 0.0
    %298 = vmatpush1.msra.mxu0 0.0
    %299 = vmatprep.subr.mxu0 0.0
    %300 = vmatpush1.msra.mxu0 0.0
    %301 = vmatprep.subr.mxu0 0.0
    %302 = vmatpush1.msra.mxu0 0.0
    %303 = vmatprep.subr.mxu0 0.0
    %304 = vmatpush1.msra.mxu0 0.0
    %305 = vmatprep.subr.mxu0 0.0
    %306 = vmatpush1.msra.mxu0 0.0
    %307 = vmatprep.subr.mxu0 0.0
    %308 = vmatpush1.msra.mxu0 0.0
    %309 = vmatprep.subr.mxu0 0.0
    %310 = vmatpush1.msra.mxu0 0.0
    %311 = vmatprep.subr.mxu0 0.0
    %312 = vmatpush1.msra.mxu0 0.0
    %313 = vmatprep.subr.mxu0 0.0
    %314 = vmatpush1.msra.mxu0 0.0
    %315 = vmatprep.subr.mxu0 0.0
    %316 = vmatpush1.msra.mxu0 0.0
    %317 = vmatprep.subr.mxu0 0.0
    %318 = vmatpush1.msra.mxu0 0.0
    %319 = vmatprep.subr.mxu0 0.0
    %320 = vmatpush1.msra.mxu0 0.0
    %321 = vmatprep.subr.mxu0 0.0
    %322 = vmatpush1.msra.mxu0 0.0
    %323 = vmatprep.subr.mxu0 0.0
    %324 = vmatpush1.msra.mxu0 0.0
    %325 = vmatprep.subr.mxu0 0.0
    %326 = vmatpush1.msra.mxu0 0.0
    %327 = vmatprep.subr.mxu0 0.0
    %328 = vmatpush1.msra.mxu0 0.0
    %329 = vmatprep.subr.mxu0 0.0
    %330 = vmatpush1.msra.mxu0 0.0
    %331 = vmatprep.subr.mxu0 0.0
    %332 = vmatpush1.msra.mxu0 0.0
    %333 = vmatprep.subr.mxu0 0.0
    %334 = vmatpush1.msra.mxu0 0.0
    %335 = vmatprep.subr.mxu0 0.0
    %336 = vmatpush1.msra.mxu0 0.0
    %337 = vmatprep.subr.mxu0 0.0
    %338 = vmatpush1.msra.mxu0 0.0
    %339 = vmatprep.subr.mxu0 0.0
    %340 = vmatpush1.msra.mxu0 0.0
    %341 = vmatprep.subr.mxu0 0.0
    %342 = vmatpush1.msra.mxu0 0.0
    %343 = vmatprep.subr.mxu0 0.0
    %344 = vmatpush1.msra.mxu0 0.0
    %345 = vmatprep.subr.mxu0 0.0
    %346 = vmatpush1.msra.mxu0 0.0
    %347 = vmatprep.subr.mxu0 0.0
    %348 = vmatpush1.msra.mxu0 0.0
    %349 = vmatprep.mubr.f32.mxu0 0.0
    %350 = vmatmul.mubr.f32.gmra.mrb[0].mxu0 %v280
    %v351 = vpop.f32.mrb[0].mxu0
    %v352 = vadd.f32 0.0, %v351
    %v353 = vpop.f32.mrb[0].mxu0
    %354 = vmatprep.mubr.f32.mxu0 0.0
    %355 = vmatmul.mubr.f32.gmra.mrb[0].mxu0 %v283
    %v356 = vpop.f32.mrb[0].mxu0
    %v357 = vadd.f32 0.0, %v356
    %v358 = vpop.f32.mrb[0].mxu0
    %359 = vdwg.mxu0
    %v360 = vlaneseq
    %v361 = vshrl.u32 %v360, 7
    %v362 = vsub.s32 3, %v361
    %v363 = vrot.slane %v73, %v362
    %364 = vmatprep.subr.mxu0 0.0
    %365 = vmatpush1.msra.mxu0 %v352
    %366 = vmatprep.subr.mxu0 0.0
    %367 = vmatpush1.msra.mxu0 %v357
    %368 = vmatprep.subr.mxu0 0.0
    %369 = vmatpush1.msra.mxu0 0.0
    %370 = vmatprep.subr.mxu0 0.0
    %371 = vmatpush1.msra.mxu0 0.0
    %372 = vmatprep.subr.mxu0 0.0
    %373 = vmatpush1.msra.mxu0 0.0
    %374 = vmatprep.subr.mxu0 0.0
    %375 = vmatpush1.msra.mxu0 0.0
    %376 = vmatprep.subr.mxu0 0.0
    %377 = vmatpush1.msra.mxu0 0.0
    %378 = vmatprep.subr.mxu0 0.0
    %379 = vmatpush1.msra.mxu0 0.0
    %380 = vmatprep.subr.mxu0 0.0
    %381 = vmatpush1.msra.mxu0 0.0
    %382 = vmatprep.subr.mxu0 0.0
    %383 = vmatpush1.msra.mxu0 0.0
    %384 = vmatprep.subr.mxu0 0.0
    %385 = vmatpush1.msra.mxu0 0.0
    %386 = vmatprep.subr.mxu0 0.0
    %387 = vmatpush1.msra.mxu0 0.0
    %388 = vmatprep.subr.mxu0 0.0
    %389 = vmatpush1.msra.mxu0 0.0
    %390 = vmatprep.subr.mxu0 0.0
    %391 = vmatpush1.msra.mxu0 0.0
    %392 = vmatprep.subr.mxu0 0.0
    %393 = vmatpush1.msra.mxu0 0.0
    %394 = vmatprep.subr.mxu0 0.0
    %395 = vmatpush1.msra.mxu0 0.0
    %396 = vmatprep.subr.mxu0 0.0
    %397 = vmatpush1.msra.mxu0 0.0
    %398 = vmatprep.subr.mxu0 0.0
    %399 = vmatpush1.msra.mxu0 0.0
    %400 = vmatprep.subr.mxu0 0.0
    %401 = vmatpush1.msra.mxu0 0.0
    %402 = vmatprep.subr.mxu0 0.0
    %403 = vmatpush1.msra.mxu0 0.0
    %404 = vmatprep.subr.mxu0 0.0
    %405 = vmatpush1.msra.mxu0 0.0
    %406 = vmatprep.subr.mxu0 0.0
    %407 = vmatpush1.msra.mxu0 0.0
    %408 = vmatprep.subr.mxu0 0.0
    %409 = vmatpush1.msra.mxu0 0.0
    %410 = vmatprep.subr.mxu0 0.0
    %411 = vmatpush1.msra.mxu0 0.0
    %412 = vmatprep.subr.mxu0 0.0
    %413 = vmatpush1.msra.mxu0 0.0
    %414 = vmatprep.subr.mxu0 0.0
    %415 = vmatpush1.msra.mxu0 0.0
    %416 = vmatprep.subr.mxu0 0.0
    %417 = vmatpush1.msra.mxu0 0.0
    %418 = vmatprep.subr.mxu0 0.0
    %419 = vmatpush1.msra.mxu0 0.0
    %420 = vmatprep.subr.mxu0 0.0
    %421 = vmatpush1.msra.mxu0 0.0
    %422 = vmatprep.subr.mxu0 0.0
    %423 = vmatpush1.msra.mxu0 0.0
    %424 = vmatprep.subr.mxu0 0.0
    %425 = vmatpush1.msra.mxu0 0.0
    %426 = vmatprep.subr.mxu0 0.0
    %427 = vmatpush1.msra.mxu0 0.0
    %428 = vmatprep.mubr.f32.mxu0 0.0
    %429 = vmatmul.mubr.f32.gmra.mrb[0].mxu0 %v192
    %v430 = vpop.f32.mrb[0].mxu0
    %v431 = vadd.f32 %v363, %v430
    %v432 = vpop.f32.mrb[0].mxu0
    %433 = vmatprep.mubr.f32.mxu0 0.0
    %434 = vmatmul.mubr.f32.gmra.mrb[0].mxu0 %v195
    %v435 = vpop.f32.mrb[0].mxu0
    %v436 = vadd.f32 %v363, %v435
    %v437 = vpop.f32.mrb[0].mxu0
    %438 = vdwg.mxu0
    %v439 = vmax.f32 %v431, 0.0
    %v440 = vmax.f32 %v436, 0.0
    %s441 = scalar_lea.vmem [#allocation5], 64
    %v442 = vld [vmem:[%s441] sm:$0xff]
    %v443 = vld [vmem:[%s441 + $0x8] sm:$0xff]
    %v444 = vld [vmem:[%s441 + $0x10] sm:$0xff]
    %v445 = vld [vmem:[%s441 + $0x18] sm:$0xff]
    %v447 = vsel %vm105, %v439, 0
    %v450 = vsel %vm105, %v440, 0
    %452 = vmatprep.subr.mxu0 0.0
    %453 = vmatpush1.msra.mxu0 %v442
    %454 = vmatprep.subr.mxu0 0.0
    %455 = vmatpush1.msra.mxu0 %v443
    %456 = vmatprep.subr.mxu0 0.0
    %457 = vmatpush1.msra.mxu0 %v444
    %458 = vmatprep.subr.mxu0 0.0
    %459 = vmatpush1.msra.mxu0 %v445
    %460 = vmatprep.subr.mxu0 0.0
    %461 = vmatpush1.msra.mxu0 0.0
    %462 = vmatprep.subr.mxu0 0.0
    %463 = vmatpush1.msra.mxu0 0.0
    %464 = vmatprep.subr.mxu0 0.0
    %465 = vmatpush1.msra.mxu0 0.0
    %466 = vmatprep.subr.mxu0 0.0
    %467 = vmatpush1.msra.mxu0 0.0
    %468 = vmatprep.subr.mxu0 0.0
    %469 = vmatpush1.msra.mxu0 0.0
    %470 = vmatprep.subr.mxu0 0.0
    %471 = vmatpush1.msra.mxu0 0.0
    %472 = vmatprep.subr.mxu0 0.0
    %473 = vmatpush1.msra.mxu0 0.0
    %474 = vmatprep.subr.mxu0 0.0
    %475 = vmatpush1.msra.mxu0 0.0
    %476 = vmatprep.subr.mxu0 0.0
    %477 = vmatpush1.msra.mxu0 0.0
    %478 = vmatprep.subr.mxu0 0.0
    %479 = vmatpush1.msra.mxu0 0.0
    %480 = vmatprep.subr.mxu0 0.0
    %481 = vmatpush1.msra.mxu0 0.0
    %482 = vmatprep.subr.mxu0 0.0
    %483 = vmatpush1.msra.mxu0 0.0
    %484 = vmatprep.subr.mxu0 0.0
    %485 = vmatpush1.msra.mxu0 0.0
    %486 = vmatprep.subr.mxu0 0.0
    %487 = vmatpush1.msra.mxu0 0.0
    %488 = vmatprep.subr.mxu0 0.0
    %489 = vmatpush1.msra.mxu0 0.0
    %490 = vmatprep.subr.mxu0 0.0
    %491 = vmatpush1.msra.mxu0 0.0
    %492 = vmatprep.subr.mxu0 0.0
    %493 = vmatpush1.msra.mxu0 0.0
    %494 = vmatprep.subr.mxu0 0.0
    %495 = vmatpush1.msra.mxu0 0.0
    %496 = vmatprep.subr.mxu0 0.0
    %497 = vmatpush1.msra.mxu0 0.0
    %498 = vmatprep.subr.mxu0 0.0
    %499 = vmatpush1.msra.mxu0 0.0
    %500 = vmatprep.subr.mxu0 0.0
    %501 = vmatpush1.msra.mxu0 0.0
    %502 = vmatprep.subr.mxu0 0.0
    %503 = vmatpush1.msra.mxu0 0.0
    %504 = vmatprep.subr.mxu0 0.0
    %505 = vmatpush1.msra.mxu0 0.0
    %506 = vmatprep.subr.mxu0 0.0
    %507 = vmatpush1.msra.mxu0 0.0
    %508 = vmatprep.subr.mxu0 0.0
    %509 = vmatpush1.msra.mxu0 0.0
    %510 = vmatprep.subr.mxu0 0.0
    %511 = vmatpush1.msra.mxu0 0.0
    %512 = vmatprep.subr.mxu0 0.0
    %513 = vmatpush1.msra.mxu0 0.0
    %514 = vmatprep.subr.mxu0 0.0
    %515 = vmatpush1.msra.mxu0 0.0
    %516 = vmatprep.mubr.f32.mxu0 0.0
    %517 = vmatmul.mubr.f32.gmra.mrb[0].mxu0 %v447
    %v518 = vpop.f32.mrb[0].mxu0
    %v519 = vadd.f32 0.0, %v518
    %v520 = vpop.f32.mrb[0].mxu0
    %521 = vmatprep.mubr.f32.mxu0 0.0
    %522 = vmatmul.mubr.f32.gmra.mrb[0].mxu0 %v450
    %v523 = vpop.f32.mrb[0].mxu0
    %v524 = vadd.f32 0.0, %v523
    %v525 = vpop.f32.mrb[0].mxu0
    %526 = vdwg.mxu0
    %v527 = vlaneseq
    %v528 = vshrl.u32 %v527, 7
    %v529 = vsub.s32 4, %v528
    %v530 = vrot.slane %v73, %v529
    %531 = vmatprep.subr.mxu0 0.0
    %532 = vmatpush1.msra.mxu0 %v519
    %533 = vmatprep.subr.mxu0 0.0
    %534 = vmatpush1.msra.mxu0 %v524
    %535 = vmatprep.subr.mxu0 0.0
    %536 = vmatpush1.msra.mxu0 0.0
    %537 = vmatprep.subr.mxu0 0.0
    %538 = vmatpush1.msra.mxu0 0.0
    %539 = vmatprep.subr.mxu0 0.0
    %540 = vmatpush1.msra.mxu0 0.0
    %541 = vmatprep.subr.mxu0 0.0
    %542 = vmatpush1.msra.mxu0 0.0
    %543 = vmatprep.subr.mxu0 0.0
    %544 = vmatpush1.msra.mxu0 0.0
    %545 = vmatprep.subr.mxu0 0.0
    %546 = vmatpush1.msra.mxu0 0.0
    %547 = vmatprep.subr.mxu0 0.0
    %548 = vmatpush1.msra.mxu0 0.0
    %549 = vmatprep.subr.mxu0 0.0
    %550 = vmatpush1.msra.mxu0 0.0
    %551 = vmatprep.subr.mxu0 0.0
    %552 = vmatpush1.msra.mxu0 0.0
    %553 = vmatprep.subr.mxu0 0.0
    %554 = vmatpush1.msra.mxu0 0.0
    %555 = vmatprep.subr.mxu0 0.0
    %556 = vmatpush1.msra.mxu0 0.0
    %557 = vmatprep.subr.mxu0 0.0
    %558 = vmatpush1.msra.mxu0 0.0
    %559 = vmatprep.subr.mxu0 0.0
    %560 = vmatpush1.msra.mxu0 0.0
    %561 = vmatprep.subr.mxu0 0.0
    %562 = vmatpush1.msra.mxu0 0.0
    %563 = vmatprep.subr.mxu0 0.0
    %564 = vmatpush1.msra.mxu0 0.0
    %565 = vmatprep.subr.mxu0 0.0
    %566 = vmatpush1.msra.mxu0 0.0
    %567 = vmatprep.subr.mxu0 0.0
    %568 = vmatpush1.msra.mxu0 0.0
    %569 = vmatprep.subr.mxu0 0.0
    %570 = vmatpush1.msra.mxu0 0.0
    %571 = vmatprep.subr.mxu0 0.0
    %572 = vmatpush1.msra.mxu0 0.0
    %573 = vmatprep.subr.mxu0 0.0
    %574 = vmatpush1.msra.mxu0 0.0
    %575 = vmatprep.subr.mxu0 0.0
    %576 = vmatpush1.msra.mxu0 0.0
    %577 = vmatprep.subr.mxu0 0.0
    %578 = vmatpush1.msra.mxu0 0.0
    %579 = vmatprep.subr.mxu0 0.0
    %580 = vmatpush1.msra.mxu0 0.0
    %581 = vmatprep.subr.mxu0 0.0
    %582 = vmatpush1.msra.mxu0 0.0
    %583 = vmatprep.subr.mxu0 0.0
    %584 = vmatpush1.msra.mxu0 0.0
    %585 = vmatprep.subr.mxu0 0.0
    %586 = vmatpush1.msra.mxu0 0.0
    %587 = vmatprep.subr.mxu0 0.0
    %588 = vmatpush1.msra.mxu0 0.0
    %589 = vmatprep.subr.mxu0 0.0
    %590 = vmatpush1.msra.mxu0 0.0
    %591 = vmatprep.subr.mxu0 0.0
    %592 = vmatpush1.msra.mxu0 0.0
    %593 = vmatprep.subr.mxu0 0.0
    %594 = vmatpush1.msra.mxu0 0.0
    %595 = vmatprep.mubr.f32.mxu0 0.0
    %596 = vmatmul.mubr.f32.gmra.mrb[0].mxu0 %v192
    %v597 = vpop.f32.mrb[0].mxu0
    %v598 = vadd.f32 %v530, %v597
    %v599 = vpop.f32.mrb[0].mxu0
    %600 = vmatprep.mubr.f32.mxu0 0.0
    %601 = vmatmul.mubr.f32.gmra.mrb[0].mxu0 %v195
    %v602 = vpop.f32.mrb[0].mxu0
    %v603 = vadd.f32 %v530, %v602
    %v604 = vpop.f32.mrb[0].mxu0
    %605 = vdwg.mxu0
    %v606 = vmax.f32 %v598, 0.0
    %v607 = vmax.f32 %v603, 0.0
    %v608 = vsel %vm105, %v606, 0.0
    %v609 = vsel %vm105, %v607, 0.0
    %v610 = vadd.f32 %v608, %v609
    %v611 = vrot.slane %v610, 4
    %v612 = vadd.f32 %v610, %v611
    %v613 = vrot.slane %v612, 2
    %v614 = vadd.f32 %v612, %v613
    %v615 = vrot.slane %v614, 1
    %v616 = vadd.f32 %v614, %v615
    %v617 = vrcp.pop 16.0
    %v618 = vmul.f32 %v616, %v617
    %v619 = vld [vmem:[#allocation8] sm:$0xff]
    %v620 = vld [vmem:[#allocation8 + $0x8] sm:$0xff]
    %v621 = vld [vmem:[#allocation8 + $0x10] sm:$0xff]
    %v622 = vld [vmem:[#allocation8 + $0x18] sm:$0xff]
    %v623 = vld [vmem:[#allocation8 + $0x20] sm:$0x1]
    %v625 = vsel %vm105, %v618, 0
    %627 = vmatprep.subr.mxu0 0.0
    %628 = vmatpush1.msra.mxu0 %v619
    %629 = vmatprep.subr.mxu0 0.0
    %630 = vmatpush1.msra.mxu0 %v620
    %631 = vmatprep.subr.mxu0 0.0
    %632 = vmatpush1.msra.mxu0 %v621
    %633 = vmatprep.subr.mxu0 0.0
    %634 = vmatpush1.msra.mxu0 %v622
    %635 = vmatprep.subr.mxu0 0.0
    %636 = vmatpush1.msra.mxu0 0.0
    %637 = vmatprep.subr.mxu0 0.0
    %638 = vmatpush1.msra.mxu0 0.0
    %639 = vmatprep.subr.mxu0 0.0
    %640 = vmatpush1.msra.mxu0 0.0
    %641 = vmatprep.subr.mxu0 0.0
    %642 = vmatpush1.msra.mxu0 0.0
    %643 = vmatprep.subr.mxu0 0.0
    %644 = vmatpush1.msra.mxu0 0.0
    %645 = vmatprep.subr.mxu0 0.0
    %646 = vmatpush1.msra.mxu0 0.0
    %647 = vmatprep.subr.mxu0 0.0
    %648 = vmatpush1.msra.mxu0 0.0
    %649 = vmatprep.subr.mxu0 0.0
    %650 = vmatpush1.msra.mxu0 0.0
    %651 = vmatprep.subr.mxu0 0.0
    %652 = vmatpush1.msra.mxu0 0.0
    %653 = vmatprep.subr.mxu0 0.0
    %654 = vmatpush1.msra.mxu0 0.0
    %655 = vmatprep.subr.mxu0 0.0
    %656 = vmatpush1.msra.mxu0 0.0
    %657 = vmatprep.subr.mxu0 0.0
    %658 = vmatpush1.msra.mxu0 0.0
    %659 = vmatprep.subr.mxu0 0.0
    %660 = vmatpush1.msra.mxu0 0.0
    %661 = vmatprep.subr.mxu0 0.0
    %662 = vmatpush1.msra.mxu0 0.0
    %663 = vmatprep.subr.mxu0 0.0
    %664 = vmatpush1.msra.mxu0 0.0
    %665 = vmatprep.subr.mxu0 0.0
    %666 = vmatpush1.msra.mxu0 0.0
    %667 = vmatprep.subr.mxu0 0.0
    %668 = vmatpush1.msra.mxu0 0.0
    %669 = vmatprep.subr.mxu0 0.0
    %670 = vmatpush1.msra.mxu0 0.0
    %671 = vmatprep.subr.mxu0 0.0
    %672 = vmatpush1.msra.mxu0 0.0
    %673 = vmatprep.subr.mxu0 0.0
    %674 = vmatpush1.msra.mxu0 0.0
    %675 = vmatprep.subr.mxu0 0.0
    %676 = vmatpush1.msra.mxu0 0.0
    %677 = vmatprep.subr.mxu0 0.0
    %678 = vmatpush1.msra.mxu0 0.0
    %679 = vmatprep.subr.mxu0 0.0
    %680 = vmatpush1.msra.mxu0 0.0
    %681 = vmatprep.subr.mxu0 0.0
    %682 = vmatpush1.msra.mxu0 0.0
    %683 = vmatprep.subr.mxu0 0.0
    %684 = vmatpush1.msra.mxu0 0.0
    %685 = vmatprep.subr.mxu0 0.0
    %686 = vmatpush1.msra.mxu0 0.0
    %687 = vmatprep.subr.mxu0 0.0
    %688 = vmatpush1.msra.mxu0 0.0
    %689 = vmatprep.subr.mxu0 0.0
    %690 = vmatpush1.msra.mxu0 0.0
    %691 = vmatprep.mubr.f32.mxu0 0.0
    %692 = vmatmul.mubr.f32.gmra.mrb[0].mxu0 %v625
    %v693 = vpop.f32.mrb[0].mxu0
    %v694 = vadd.f32 %v623, %v693
    %v695 = vpop.f32.mrb[0].mxu0
    %696 = vdwg.mxu0
    %v697 = vlaneseq
    %v698 = vshrl.u32 %v697, 7
    %v699 = vsub.s32 0, %v698
    %v700 = vrot.slane %v694, %v699
    %701 = vst [vmem:[#allocation10] sm:$0xff] %v700
    // Predicated region
    $region34: #{tpu_custom_call.1} parent=1 // pred_check
      _
    $region35: #{tpu_custom_call.1} parent=1 // pred_check_branch
      %703 = sbr.rel (0) target = $region37
    $region36: #{tpu_custom_call.1} parent=1 // pred_region
      %s705 = ssub.s32 128, 128
      %706 = vsyncadd [#allocation4], %s705
      %s708 = sshll.u32 [#allocation10], 4
      %s709 = int_to_ptr.vmem [resolvable:$true] %s708
      %711 = dma.vmem_to_hbm [thread:$0]  %s709, 128, %s4, [#allocation4]
    $region37: #{tpu_custom_call.1} parent=1 // pred_fallthru
      _
    // Predicated region
    $region38: #{tpu_custom_call.1} parent=1 // pred_check
      _
    $region39: #{tpu_custom_call.1} parent=1 // pred_check_branch
      %713 = sbr.rel (0) target = $region41
    $region40: #{tpu_custom_call.1} parent=1 // pred_region
      %714 = dma.done [#allocation4], 128
    $region41: #{tpu_custom_call.1} parent=1 // pred_fallthru
      _
    %715 = vsyncpa [#allocation3], 1
    %716 = vsyncpa [#allocation6], 1
    %717 = vsyncpa [#allocation9], 1
    %718 = vsyncpa [#allocation4], 1

</llo_original>
